<compile_context>
chip_gen: v7x
topology: tpu7x:2x2x1
jax: 0.10.0
libtpu: 0.0.40
codegen_flags: <defaults>
</compile_context>

<pallas_src>
import functools
import math

import jax
import jax.numpy as jnp
from jax.experimental import pallas as pl
from jax.experimental.pallas import tpu as pltpu

_LOG2 = math.log(2.0)


def _shifted_softplus(x):
    # softplus(x) - log(2), numerically stable.
    # (Kept in f32: bf16 EUP would help on v6e/v7x but hurts v5e.)
    return jnp.maximum(x, 0.0) + jnp.log1p(jnp.exp(-jnp.abs(x))) - _LOG2


def atomwise_kernel(x_ref, mask_ref, w1_ref, b1_ref, w2t_ref, o_ref, *, n_out):
    # x_ref:    [bb, A, n_in] f32   one batch-block of representations (cast to bf16 here)
    # mask_ref: [bb, A]       f32   atom mask (2-D: lane-dense, cheap DMA)
    # w1_ref:   [n_in, H]     bf16, b1_ref: [1, H] f32
    # w2t_ref:  [n_out, H]    f32   (stddev already folded in)
    # o_ref:    [bb, n_out]   f32   per-molecule masked sums of the scaled head
    bb, A, n_in = x_ref.shape
    H = w1_ref.shape[1]

    # Layer 1: Dense (bf16 MXU matmul, f32 accumulate) + shifted softplus (f32).
    x2d = x_ref[...].reshape(bb * A, n_in).astype(jnp.bfloat16)
    h = jnp.dot(x2d, w1_ref[...], preferred_element_type=jnp.float32)
    h = _shifted_softplus(h + b1_ref[...])                       # [bb*A, H] f32

    # Masked per-molecule sum of hidden activations (A is a multiple of 8, so the
    # reshape is a free reinterpretation of the sublane axis).
    mask = mask_ref[...]                                         # [bb, A]
    hsum = jnp.sum(h.reshape(bb, A, H) * mask[:, :, None], axis=1)   # [bb, H]

    w2t = w2t_ref[...]                                           # [n_out, H]
    if n_out == 1:
        # VPU broadcast-multiply + lane reduction; avoids an N=1 MXU matmul.
        y = jnp.sum(hsum * w2t, axis=-1, keepdims=True)          # [bb, 1]
    else:
        y = jax.lax.dot_general(hsum, w2t, (((1,), (1,)), ((), ())),
                                preferred_element_type=jnp.float32)  # [bb, n_out]
    o_ref[...] = y.astype(o_ref.dtype)


def atomwise_forward(representation, atom_mask, params, mean=0.0, stddev=1.0,
                     *, block_b=None):
    """representation: [B, A, n_in] f32, atom_mask: [B, A]  ->  y: [B, n_out]."""
    B, A, n_in = representation.shape
    w1, b1, w2, b2 = params
    H, n_out = w1.shape[1], w2.shape[1]

    x = representation                       # stays f32; cast to bf16 per-tile in-kernel
    mask = atom_mask.astype(jnp.float32)

    # Zero-pad the atom axis only when it is not sublane-aligned; padded atoms carry
    # mask 0 so the padded result is exact.
    pad_a = (-A) % 8
    if pad_a:
        x = jnp.pad(x, ((0, 0), (0, pad_a), (0, 0)))
        mask = jnp.pad(mask, ((0, 0), (0, pad_a)))
    A_pad = A + pad_a

    mean = jnp.asarray(mean, jnp.float32)
    stddev = jnp.asarray(stddev, jnp.float32)

    # Tiny weight-side prep (negligible HBM traffic).
    w1_c = w1.astype(jnp.bfloat16)                               # [n_in, H]
    b1_2d = b1.reshape(1, H).astype(jnp.float32)                 # [1, H]
    w2t = (w2.astype(jnp.float32) * stddev).T                    # [n_out, H], std folded
    shift = b2.astype(jnp.float32) * stddev + mean               # [n_out]

    # Batch-block size: target ~4 MiB f32 x-tiles (amortizes per-step pipeline
    # overhead, fits v7x's 64 MiB VMEM double-buffered); give the "parallel" axis
    # >=2 blocks when B allows so v7x megacore can shard it.
    if block_b is None:
        fit = max(1, (4 << 20) // max(1, A_pad * n_in * 4))
        block_b = min(B, 64, fit)
        if B >= 16:
            block_b = min(block_b, max(8, (B // 2) // 8 * 8))
    block_b = min(block_b, B)
    if block_b < B:
        # Non-full blocks on the mask/output sublane dim must be multiples of 8.
        block_b = max(8, (block_b // 8) * 8)
        if block_b >= B:
            block_b = B

    grid = (pl.cdiv(B, block_b),)

    # Chip-aware VMEM budget: ~70% of physical, capped at 96 MiB (v5e/v6e have
    # 128 MiB, v7x only 64 MiB).
    try:
        vmem_cap = pltpu.get_tpu_info().vmem_capacity_bytes
        vmem_limit = int(min(96 * 1024 * 1024, 0.70 * vmem_cap))
    except Exception:
        vmem_limit = 48 * 1024 * 1024

    kernel = functools.partial(atomwise_kernel, n_out=n_out)

    y_contrib = pl.pallas_call(
        kernel,
        out_shape=jax.ShapeDtypeStruct((B, n_out), jnp.float32),
        grid_spec=pltpu.PrefetchScalarGridSpec(
            num_scalar_prefetch=0,
            grid=grid,
            in_specs=[
                pl.BlockSpec((block_b, A_pad, n_in), lambda i: (i, 0, 0)),
                pl.BlockSpec((block_b, A_pad), lambda i: (i, 0)),
                # Weights/biases: constant index_map -> fetched once, VMEM-resident.
                pl.BlockSpec((n_in, H), lambda i: (0, 0)),
                pl.BlockSpec((1, H), lambda i: (0, 0)),
                pl.BlockSpec((n_out, H), lambda i: (0, 0)),
            ],
            out_specs=pl.BlockSpec((block_b, n_out), lambda i: (i, 0)),
        ),
        compiler_params=pltpu.CompilerParams(
            dimension_semantics=("parallel",),
            vmem_limit_bytes=vmem_limit,
        ),
    )(x, mask, w1_c, b1_2d, w2t)

    # Tiny XLA epilogue: per-atom bias + ScaleShift offset re-associated onto the
    # per-molecule real-atom count (keeps mean/stddev out of the kernel).
    n_atoms = jnp.sum(atom_mask.astype(jnp.float32), axis=1, keepdims=True)   # [B, 1]
    return y_contrib + n_atoms * shift[None, :]


def _xavier_uniform(key, fan_in, fan_out):
    bound = math.sqrt(6.0 / (fan_in + fan_out))
    return jax.random.uniform(key, (fan_in, fan_out), jnp.float32, -bound, bound)


def make_params(key, n_in, n_out=1):
    """Pyramidal MLP (n_layers=2, n_neurons=None): n_in -> n_in//2 -> n_out."""
    hidden = n_in // 2
    k1, k2 = jax.random.split(key)
    w1 = _xavier_uniform(k1, n_in, hidden)
    b1 = jnp.zeros((hidden,), jnp.float32)
    w2 = _xavier_uniform(k2, hidden, n_out)
    b2 = jnp.zeros((n_out,), jnp.float32)
    return w1, b1, w2, b2


def _reference(representation, atom_mask, params, mean=0.0, stddev=1.0):
    # Mirrors the kernel's bf16 layer-1 inputs (f32 accumulation) for a tight compare.
    w1, b1, w2, b2 = params
    x = representation.astype(jnp.bfloat16).astype(jnp.float32)
    w1f = w1.astype(jnp.bfloat16).astype(jnp.float32)
    h = _shifted_softplus(
        jnp.matmul(x, w1f, precision=jax.lax.Precision.HIGHEST) + b1)
    yi = jnp.matmul(h, w2, precision=jax.lax.Precision.HIGHEST) + b2
    yi = yi * stddev + mean
    return jnp.sum(yi * atom_mask[..., None], axis=1)


if __name__ == "__main__":
    key = jax.random.PRNGKey(0)
    k_rep, k_mask, k_par = jax.random.split(key, 3)

    B, A, n_in, n_out = 2, 8, 32, 1

    representation = jax.random.normal(k_rep, (B, A, n_in), jnp.float32)
    # atomic numbers are carried in the SchNet input dict but unused by Atomwise math
    atomic_numbers = jax.random.randint(k_mask, (B, A), 1, 10)
    # mask out the last 2 atoms of molecule 1 ("padding" atoms)
    atom_mask = jnp.ones((B, A), jnp.float32).at[1, A - 2:].set(0.0)

    params = make_params(k_par, n_in, n_out)
    mean, stddev = -0.3, 1.7   # non-trivial ScaleShift to exercise the re-association

    y = atomwise_forward(representation, atom_mask, params, mean, stddev)
    y = jax.block_until_ready(y)

    y_ref = _reference(representation, atom_mask, params, mean, stddev)
    assert y.shape == (B, n_out)
    assert jnp.allclose(y, y_ref, atol=1e-3, rtol=1e-3), (y, y_ref)

    print("KERNEL_OK")
</pallas_src>

<mosaic_0001>
module attributes {stable_mosaic.version = 11 : i64} {
  func.func @atomwise_kernel(%arg0: i32, %arg1: memref<2x8x32xf32, #tpu.memory_space<vmem>>, %arg2: memref<2x8xf32, #tpu.memory_space<vmem>>, %arg3: memref<32x16xbf16, #tpu.memory_space<vmem>>, %arg4: memref<1x16xf32, #tpu.memory_space<vmem>>, %arg5: memref<1x16xf32, #tpu.memory_space<vmem>>, %arg6: memref<2x1xf32, #tpu.memory_space<vmem>>) attributes {dimension_semantics = [#tpu.dimension_semantics<parallel>], iteration_bounds = array<i64: 1>, scalar_prefetch = 0 : i64, scratch_operands = 0 : i64, tpu.core_type = #tpu.core_type<tc>, window_params = [{transform_indices = @transform_0, window_bounds = array<i64: 2, 8, 32>}, {transform_indices = @transform_1, window_bounds = array<i64: 2, 8>}, {pipeline_mode = #tpu.pipeline_mode<synchronous>, transform_indices = @transform_2, window_bounds = array<i64: 32, 16>}, {pipeline_mode = #tpu.pipeline_mode<synchronous>, transform_indices = @transform_3, window_bounds = array<i64: 1, 16>}, {pipeline_mode = #tpu.pipeline_mode<synchronous>, transform_indices = @transform_4, window_bounds = array<i64: 1, 16>}, {transform_indices = @transform_5, window_bounds = array<i64: 2, 1>}]} {
    %c0 = arith.constant 0 : index
    %c0_0 = arith.constant 0 : index
    %c0_1 = arith.constant 0 : index
    %0 = vector.load %arg1[%c0, %c0_0, %c0_1] : memref<2x8x32xf32, #tpu.memory_space<vmem>>, vector<2x8x32xf32>
    %1 = vector.shape_cast %0 : vector<2x8x32xf32> to vector<16x32xf32>
    %2 = arith.truncf %1 : vector<16x32xf32> to vector<16x32xbf16>
    %c0_2 = arith.constant 0 : index
    %c0_3 = arith.constant 0 : index
    %3 = vector.load %arg3[%c0_2, %c0_3] : memref<32x16xbf16, #tpu.memory_space<vmem>>, vector<32x16xbf16>
    %cst = arith.constant dense<0.000000e+00> : vector<16x16xf32>
    %4 = tpu.matmul %2, %3, %cst {dimension_numbers = #tpu.dot_dimension_numbers<[1], [0], [0], [1], [0, 0, 1, 1], [], []>} : vector<16x32xbf16>, vector<32x16xbf16>, vector<16x16xf32> -> vector<16x16xf32>
    %c0_4 = arith.constant 0 : index
    %c0_5 = arith.constant 0 : index
    %5 = vector.load %arg4[%c0_4, %c0_5] : memref<1x16xf32, #tpu.memory_space<vmem>>, vector<1x16xf32>
    %6 = vector.broadcast %5 : vector<1x16xf32> to vector<16x16xf32>
    %7 = arith.addf %4, %6 : vector<16x16xf32>
    %cst_6 = arith.constant 0.000000e+00 : f32
    %8 = vector.broadcast %cst_6 : f32 to vector<16x16xf32>
    %9 = arith.maximumf %7, %8 : vector<16x16xf32>
    %10 = math.absf %7 : vector<16x16xf32>
    %cst_7 = arith.constant 0.000000e+00 : f32
    %11 = vector.broadcast %cst_7 : f32 to vector<16x16xf32>
    %12 = arith.subf %11, %10 : vector<16x16xf32>
    %13 = math.exp %12 : vector<16x16xf32>
    %14 = math.log1p %13 : vector<16x16xf32>
    %15 = arith.addf %9, %14 : vector<16x16xf32>
    %cst_8 = arith.constant 0.693147182 : f32
    %16 = vector.broadcast %cst_8 : f32 to vector<16x16xf32>
    %17 = arith.subf %15, %16 : vector<16x16xf32>
    %c0_9 = arith.constant 0 : index
    %c0_10 = arith.constant 0 : index
    %18 = vector.load %arg2[%c0_9, %c0_10] : memref<2x8xf32, #tpu.memory_space<vmem>>, vector<2x8xf32>
    %19 = vector.shape_cast %17 : vector<16x16xf32> to vector<2x8x16xf32>
    %20 = vector.shape_cast %18 : vector<2x8xf32> to vector<2x8x1xf32>
    %21 = vector.broadcast %20 : vector<2x8x1xf32> to vector<2x8x16xf32>
    %22 = arith.mulf %19, %21 : vector<2x8x16xf32>
    %cst_11 = arith.constant dense<0.000000e+00> : vector<2x16xf32>
    %23 = vector.multi_reduction <add>, %22, %cst_11 [1] : vector<2x8x16xf32> to vector<2x16xf32>
    %c0_12 = arith.constant 0 : index
    %c0_13 = arith.constant 0 : index
    %24 = vector.load %arg5[%c0_12, %c0_13] : memref<1x16xf32, #tpu.memory_space<vmem>>, vector<1x16xf32>
    %25 = vector.broadcast %24 : vector<1x16xf32> to vector<2x16xf32>
    %26 = arith.mulf %23, %25 : vector<2x16xf32>
    %cst_14 = arith.constant dense<0.000000e+00> : vector<2xf32>
    %27 = vector.multi_reduction <add>, %26, %cst_14 [1] : vector<2x16xf32> to vector<2xf32>
    %28 = vector.shape_cast %27 : vector<2xf32> to vector<2x1xf32>
    %c0_15 = arith.constant 0 : index
    %c0_16 = arith.constant 0 : index
    %29 = vector.load %arg6[%c0_15, %c0_16] : memref<2x1xf32, #tpu.memory_space<vmem>>, vector<2x1xf32>
    tpu.vector_store %arg6[%c0_15, %c0_16], %28 {strides = array<i32>} : memref<2x1xf32, #tpu.memory_space<vmem>>, vector<2x1xf32>,
    return
  }
  func.func @transform_0(%arg0: i32) -> (i32, i32, i32) {
    %c0_i32 = arith.constant 0 : i32
    %c0_i32_0 = arith.constant 0 : i32
    %c0_i32_1 = arith.constant 0 : i32
    return %arg0, %c0_i32, %c0_i32_0 : i32, i32, i32
  }
  func.func @transform_1(%arg0: i32) -> (i32, i32) {
    %c0_i32 = arith.constant 0 : i32
    %c0_i32_0 = arith.constant 0 : i32
    return %arg0, %c0_i32 : i32, i32
  }
  func.func @transform_2(%arg0: i32) -> (i32, i32) {
    %c0_i32 = arith.constant 0 : i32
    %c0_i32_0 = arith.constant 0 : i32
    %c0_i32_1 = arith.constant 0 : i32
    return %c0_i32, %c0_i32_0 : i32, i32
  }
  func.func @transform_3(%arg0: i32) -> (i32, i32) {
    %c0_i32 = arith.constant 0 : i32
    %c0_i32_0 = arith.constant 0 : i32
    %c0_i32_1 = arith.constant 0 : i32
    return %c0_i32, %c0_i32_0 : i32, i32
  }
  func.func @transform_4(%arg0: i32) -> (i32, i32) {
    %c0_i32 = arith.constant 0 : i32
    %c0_i32_0 = arith.constant 0 : i32
    %c0_i32_1 = arith.constant 0 : i32
    return %c0_i32, %c0_i32_0 : i32, i32
  }
  func.func @transform_5(%arg0: i32) -> (i32, i32) {
    %c0_i32 = arith.constant 0 : i32
    %c0_i32_0 = arith.constant 0 : i32
    return %arg0, %c0_i32 : i32, i32
  }
}

</mosaic_0001>

<llo_original>
// kernel: tpu_custom_call.1
$region0: #{tpu_custom_call.1}
  #allocation0 [shape = 'u32[]', space=smem, size = 0x4, offset = 0x4, fixed_abs, tag = 'smem constant byte address 0x4 - core index']
  #allocation1 [shape = 'u32[144,128]{1,0:T(1,128)}', space=vmem, size = 0x12000, scoped, tag = 'internal scratch']
  %s0 = inlined_call_operand.vmem [shape: f32[2,8,32], index: 0, kind: input, shape index: {}]
  %s1 = inlined_call_operand.vmem [shape: f32[2,8], index: 1, kind: input, shape index: {}]
  %s2 = inlined_call_operand.vmem [shape: bf16[32,16], index: 2, kind: input, shape index: {}]
  %s3 = inlined_call_operand.vmem [shape: f32[1,16], index: 3, kind: input, shape index: {}]
  %s4 = inlined_call_operand.vmem [shape: f32[1,16], index: 4, kind: input, shape index: {}]
  %s5 = inlined_call_operand.vmem [shape: f32[2,1], index: 5, kind: output, shape index: {}]
  %s6 = sld [smem:[#allocation0]]
  $region30: #{tpu_custom_call.1} parent=0
    _
  %s8 = ssub.s32 1, %s6
  %s9 = scalar_select 0, %s8, %s6
  // Predicated region
  $region2: #{tpu_custom_call.1} parent=0 // pred_check
    _
  $region3: #{tpu_custom_call.1} parent=0 // pred_check_branch
    %11 = sbr.rel (0) target = $region5
  $region4: #{tpu_custom_call.1} parent=0 // pred_region
    _
  $region5: #{tpu_custom_call.1} parent=0 // pred_fallthru
    _
  // Predicated region
  $region6: #{tpu_custom_call.1} parent=0 // pred_check
    _
  $region7: #{tpu_custom_call.1} parent=0 // pred_check_branch
    %13 = sbr.rel (0) target = $region9
  $region8: #{tpu_custom_call.1} parent=0 // pred_region
    _
  $region9: #{tpu_custom_call.1} parent=0 // pred_fallthru
    _
  // Predicated region
  $region10: #{tpu_custom_call.1} parent=0 // pred_check
    _
  $region11: #{tpu_custom_call.1} parent=0 // pred_check_branch
    %15 = sbr.rel (0) target = $region13
  $region12: #{tpu_custom_call.1} parent=0 // pred_region
    _
  $region13: #{tpu_custom_call.1} parent=0 // pred_fallthru
    _
  // Predicated region
  $region14: #{tpu_custom_call.1} parent=0 // pred_check
    _
  $region15: #{tpu_custom_call.1} parent=0 // pred_check_branch
    %17 = sbr.rel (0) target = $region17
  $region16: #{tpu_custom_call.1} parent=0 // pred_region
    _
  $region17: #{tpu_custom_call.1} parent=0 // pred_fallthru
    _
  // Predicated region
  $region18: #{tpu_custom_call.1} parent=0 // pred_check
    _
  $region19: #{tpu_custom_call.1} parent=0 // pred_check_branch
    %19 = sbr.rel (0) target = $region21
  $region20: #{tpu_custom_call.1} parent=0 // pred_region
    _
  $region21: #{tpu_custom_call.1} parent=0 // pred_fallthru
    _
  %v21 = vld [vmem:[%s0] sm:$0xff]
  %v22 = vld [vmem:[%s0 + $0x8] sm:$0xff]
  %v23 = vpack.c.bf16 %v22, %v21
  %v24 = vld [vmem:[%s2] sm:$0xf]
  %v25 = vld [vmem:[%s2 + $0x4] sm:$0xf]
  %v26 = vld [vmem:[%s2 + $0x8] sm:$0xf]
  %v27 = vld [vmem:[%s2 + $0xc] sm:$0xf]
  %v28 = vld [vmem:[%s3] sm:$0x1]
  %v30 = vlaneseq
  %v31 = vshrl.u32 %v30, 7
  %v32 = vsub.s32 0, %v31
  %v33 = vrot.slane %v28, %v32
  %v39 = vunpack.c.l.b16 %v24
  %v40 = vunpack.c.l.b16 %v25
  %v41 = vunpack.c.l.b16 %v26
  %v42 = vunpack.c.l.b16 %v27
  %v43 = vpack.c.b16 %v40, %v39
  %v44 = vpack.c.b16 %v42, %v41
  %vm47 = vcmask 261120
  %v49 = vsel %vm47, %v23, 0
  %51 = vmatprep.subr.bf16.mxu0 0
  %52 = vmatpush1.bf16.msra.mxu0 %v43
  %53 = vmatprep.subr.bf16.mxu0 0
  %54 = vmatpush1.bf16.msra.mxu0 %v44
  %55 = vmatprep.subr.bf16.mxu0 0
  %56 = vmatpush1.bf16.msra.mxu0 0
  %57 = vmatprep.subr.bf16.mxu0 0
  %58 = vmatpush1.bf16.msra.mxu0 0
  %59 = vmatprep.subr.bf16.mxu0 0
  %60 = vmatpush1.bf16.msra.mxu0 0
  %61 = vmatprep.subr.bf16.mxu0 0
  %62 = vmatpush1.bf16.msra.mxu0 0
  %63 = vmatprep.subr.bf16.mxu0 0
  %64 = vmatpush1.bf16.msra.mxu0 0
  %65 = vmatprep.subr.bf16.mxu0 0
  %66 = vmatpush1.bf16.msra.mxu0 0
  %67 = vmatprep.subr.bf16.mxu0 0
  %68 = vmatpush1.bf16.msra.mxu0 0
  %69 = vmatprep.subr.bf16.mxu0 0
  %70 = vmatpush1.bf16.msra.mxu0 0
  %71 = vmatprep.subr.bf16.mxu0 0
  %72 = vmatpush1.bf16.msra.mxu0 0
  %73 = vmatprep.subr.bf16.mxu0 0
  %74 = vmatpush1.bf16.msra.mxu0 0
  %75 = vmatprep.subr.bf16.mxu0 0
  %76 = vmatpush1.bf16.msra.mxu0 0
  %77 = vmatprep.subr.bf16.mxu0 0
  %78 = vmatpush1.bf16.msra.mxu0 0
  %79 = vmatprep.subr.bf16.mxu0 0
  %80 = vmatpush1.bf16.msra.mxu0 0
  %81 = vmatprep.subr.bf16.mxu0 0
  %82 = vmatpush1.bf16.msra.mxu0 0
  %83 = vmatprep.mubr.bf16.mxu0 0
  %84 = vmatmul.mubr.bf16.gmra.mrb[0].mxu0 %v49
  %v85 = vpop.f32.mrb[0].mxu0
  %v86 = vadd.f32 %v33, %v85
  %v87 = vpop.f32.mrb[0].mxu0
  %v88 = vpop.f32.mrb[0].mxu0
  %v89 = vadd.f32 %v33, %v88
  %v90 = vpop.f32.mrb[0].mxu0
  %91 = vdwg.mxu0
  %v92 = vmax.f32 %v86, 0.0
  %v93 = vmax.f32 %v89, 0.0
  %v94 = vand.u32 2147483647, %v86
  %v95 = vand.u32 2147483647, %v89
  %v96 = vsub.f32 0.0, %v94
  %v97 = vsub.f32 0.0, %v95
  %v98 = vmul.f32 %v96, 1.442695
  %v99 = vpow.pop %v98
  %v100 = vmul.f32 %v97, 1.442695
  %v101 = vpow.pop %v100
  %v102 = vadd.f32 %v99, 1.0
  %v103 = vlog2.pop %v102
  %v104 = vmul.f32 %v103, 0.6931472
  %v105 = vmul.f32 -0.5, %v99
  %v106 = vadd.f32 %v105, 1.0
  %v107 = vmul.f32 %v106, %v99
  %v108 = vand.u32 2147483647, %v99
  %vm109 = vcmp.lt.f32.partialorder %v108, 0.0004427343
  %v110 = vsel %vm109, %v107, %v104
  %v111 = vadd.f32 %v101, 1.0
  %v112 = vlog2.pop %v111
  %v113 = vmul.f32 %v112, 0.6931472
  %v114 = vmul.f32 -0.5, %v101
  %v115 = vadd.f32 %v114, 1.0
  %v116 = vmul.f32 %v115, %v101
  %v117 = vand.u32 2147483647, %v101
  %vm118 = vcmp.lt.f32.partialorder %v117, 0.0004427343
  %v119 = vsel %vm118, %v116, %v113
  %v120 = vadd.f32 %v92, %v110
  %v121 = vadd.f32 %v93, %v119
  %v122 = vsub.f32 %v120, 0.6931472
  %v123 = vsub.f32 %v121, 0.6931472
  %v124 = vld [vmem:[%s1] sm:$0x3]
  %v125 = vlaneseq
  %v126 = vshrl.u32 %v125, 7
  %v127 = vsub.s32 0, %v126
  %v128 = vrot.slane %v124, %v127
  %130 = vbcast.lane.b32.xlu0 %v128, 256
  %v131 = vpop.permute.xlu0 %130
  %v132 = vlaneseq
  %v133 = vshrl.u32 %v132, 7
  %v134 = vsub.s32 1, %v133
  %v135 = vrot.slane %v124, %v134
  %137 = vbcast.lane.b32.xlu0 %v135, 256
  %v138 = vpop.permute.xlu0 %137
  %v139 = vmul.f32 %v122, %v131
  %v140 = vmul.f32 %v123, %v138
  %vm141 = vcmask 130048
  %v142 = vsel %vm141, %v139, 0.0
  %v143 = vrot.slane %v142, 4
  %v144 = vadd.f32 %v142, %v143
  %v145 = vrot.slane %v144, 2
  %v146 = vadd.f32 %v144, %v145
  %v147 = vrot.slane %v146, 1
  %v148 = vadd.f32 %v146, %v147
  %v149 = vsel %vm141, %v140, 0.0
  %v150 = vrot.slane %v149, 4
  %v151 = vadd.f32 %v149, %v150
  %v152 = vrot.slane %v151, 2
  %v153 = vadd.f32 %v151, %v152
  %v154 = vrot.slane %v153, 1
  %v155 = vadd.f32 %v153, %v154
  %v156 = vld [vmem:[%s4] sm:$0x1]
  %v158 = vlaneseq
  %v159 = vshrl.u32 %v158, 7
  %v160 = vsub.s32 0, %v159
  %v161 = vrot.slane %v156, %v160
  %v163 = vmul.f32 %v148, %v161
  %v164 = vmul.f32 %v155, %v161
  %v167 = vrot.slane %v164, 7
  %vm168 = vcmask 1041409
  %v169 = vsel %vm168, %v167, %v163
  %vm171 = vcmask 123904
  %v172 = vsel %vm171, %v169, 0.0
  %173 = vadd.xlane.f32.xlu0 %v172
  %v174 = vpop.xlane.xlu0 %173
  %vm175 = vcmask 1024
  %176 = vst.msk [vmem:[%s5] sm:$0x3] %vm175, %v174
  // Predicated region
  $region22: #{tpu_custom_call.1} parent=0 // pred_check
    _
  $region23: #{tpu_custom_call.1} parent=0 // pred_check_branch
    %178 = sbr.rel (0) target = $region25
  $region24: #{tpu_custom_call.1} parent=0 // pred_region
    _
  $region25: #{tpu_custom_call.1} parent=0 // pred_fallthru
    _
  // Predicated region
  $region26: #{tpu_custom_call.1} parent=0 // pred_check
    _
  $region27: #{tpu_custom_call.1} parent=0 // pred_check_branch
    %180 = sbr.rel (0) target = $region29
  $region28: #{tpu_custom_call.1} parent=0 // pred_region
    _
  $region29: #{tpu_custom_call.1} parent=0 // pred_fallthru
    _

</llo_original>
